<compile_context>
chip_gen: v7x
topology: tpu7x:2x2x1
jax: 0.10.0
libtpu: 0.0.40
codegen_flags: <defaults>
</compile_context>

<pallas_src>
import functools

import jax
import jax.numpy as jnp
from jax.experimental import pallas as pl
from jax.experimental.pallas import tpu as pltpu


def _round_up(x, m):
    return ((x + m - 1) // m) * m


_SELECTOR_BUDGET_BYTES = 6 << 20   # per-tile one-hot selector budget (f32)
_MAX_BLOCK_B = 32768               # lane-tile cap for small tables


def _ncf_kernel(nu_pad, ni_pad, uidx_ref, iidx_ref, scores_ref, b_ref, o_ref):
    # uidx_ref, iidx_ref: (1, TB) int32 VMEM -- user/item ids, batch on lanes.
    # scores_ref: (1, nu_pad + ni_pad) f32 VMEM -- folded per-entity scores
    #             [W @ w_user (padded) | H @ w_item (padded)], resident every step.
    # b_ref : (1,) f32 SMEM -- linear bias.
    # o_ref : (1, TB) f32 VMEM -- sigmoid(logits), lane-dense output.
    tb = o_ref.shape[1]

    uidx = uidx_ref[...]                                        # (1, TB) int32
    iidx = iidx_ref[...]                                        # (1, TB) int32

    # One compare per selector element (same VPU cost as before), but a single
    # merged RHS so only one MXU contraction / result-pop stream is issued.
    # Out-of-range or padded indices simply produce an all-zero column
    # (silent zero score) -- padded outputs are discarded by the wrapper.
    u_sel = jnp.where(
        jax.lax.broadcasted_iota(jnp.int32, (nu_pad, tb), 0) == uidx, 1.0, 0.0)
    v_sel = jnp.where(
        jax.lax.broadcasted_iota(jnp.int32, (ni_pad, tb), 0) == iidx, 1.0, 0.0)
    sel = jnp.concatenate([u_sel, v_sel], axis=0)               # (nu_pad+ni_pad, TB)

    # (1, ents) @ (ents, TB) -> (1, TB): the contraction both gathers and sums the
    # user and item scores.  Precision pinned so the gathered f32 scores are exact.
    logits = jnp.dot(scores_ref[...], sel,
                     preferred_element_type=jnp.float32,
                     precision=jax.lax.Precision.HIGHEST)       # (1, TB)

    o_ref[...] = jax.nn.sigmoid(logits + b_ref[0])


def ncf_forward(x, W_table, H_table, lin_w, lin_b, *, block_b=None):
    """Pallas implementation of NCF_BaseModel.forward(x, is_training=False)."""
    B = x.shape[0]
    num_users, k = W_table.shape
    num_items = H_table.shape[0]

    # Pad each table's score row to a sublane multiple so the in-kernel concat of
    # the two selector halves is layout-preserving (no relayout copies).
    nu_pad = _round_up(num_users, 8)
    ni_pad = _round_up(num_items, 8)
    ents = nu_pad + ni_pad

    # The one-hot gather only scales to small tables: even at the minimum tile
    # (128 lanes) the selector must fit its VMEM budget.
    if 4 * ents * 128 > _SELECTOR_BUDGET_BYTES:
        # TODO(synk): large-table path -- scalar-prefetch the index tiles and DMA
        # row-gather from HBM (memory_space=pl.ANY + pltpu.make_async_copy).
        raise NotImplementedError("embedding tables too large for the one-hot gather path")

    # ---- tile-size selection -------------------------------------------------
    if block_b is None:
        block_b = _SELECTOR_BUDGET_BYTES // (4 * ents)
        block_b = max(128, min(_MAX_BLOCK_B, (block_b // 128) * 128))
    block_b = max(128, _round_up(block_b, 128))

    lane_batch = _round_up(B, 128)
    block_b = min(block_b, lane_batch)
    # Megacore (v7x): when the batch spans >=2 lane tiles, keep >=2 (up to 4) grid
    # steps so the "parallel" axis can shard across both TensorCores.
    n_lane_tiles = lane_batch // 128
    if n_lane_tiles >= 2:
        target_steps = min(4, n_lane_tiles)
        block_b = min(block_b, max(128, _round_up(pl.cdiv(B, target_steps), 128)))

    B_pad = _round_up(B, block_b)
    grid = (B_pad // block_b,)

    # ---- host-side prep ------------------------------------------------------
    # Indices lane-dense (batch on the last axis); pad with index 0 (valid row),
    # padded outputs are discarded below.
    uidx = jnp.pad(x[:, 0].astype(jnp.int32), (0, B_pad - B)).reshape(1, B_pad)
    iidx = jnp.pad(x[:, 1].astype(jnp.int32), (0, B_pad - B)).reshape(1, B_pad)

    # Fold Linear(2k->1) into per-entity scores (exact f32 elementwise mul + sum).
    w_flat = lin_w.reshape(-1).astype(jnp.float32)                    # (2k,)
    u_score = jnp.sum(W_table.astype(jnp.float32) * w_flat[:k][None, :], axis=1)
    v_score = jnp.sum(H_table.astype(jnp.float32) * w_flat[k:][None, :], axis=1)
    scores = jnp.concatenate([
        jnp.pad(u_score, (0, nu_pad - num_users)),
        jnp.pad(v_score, (0, ni_pad - num_items)),
    ]).reshape(1, ents)                                               # (1, ents) f32
    b_flat = lin_b.reshape(-1).astype(jnp.float32)                    # (1,) -> SMEM

    # ---- explicit VMEM budget -------------------------------------------------
    sel_bytes = 4 * ents * block_b                 # one-hot selector
    io_bytes = 2 * 2 * (4 * block_b)               # two int32 index tiles, double-buffered
    io_bytes += 2 * (4 * block_b)                  # f32 output tile, double-buffered
    io_bytes += 2 * (4 * ents)                     # resident score row, double-buffered
    vmem_limit = int(min(64 << 20, max(32 << 20, 3 * sel_bytes + io_bytes + (4 << 20))))

    kernel = functools.partial(_ncf_kernel, nu_pad, ni_pad)

    out = pl.pallas_call(
        kernel,
        out_shape=jax.ShapeDtypeStruct((1, B_pad), jnp.float32),
        grid_spec=pltpu.PrefetchScalarGridSpec(
            num_scalar_prefetch=0,
            grid=grid,
            in_specs=[
                pl.BlockSpec((1, block_b), lambda i: (0, i)),          # user ids
                pl.BlockSpec((1, block_b), lambda i: (0, i)),          # item ids
                pl.BlockSpec((1, ents), lambda i: (0, 0)),             # folded scores
                pl.BlockSpec(memory_space=pltpu.MemorySpace.SMEM),     # bias
            ],
            out_specs=pl.BlockSpec((1, block_b), lambda i: (0, i)),
        ),
        compiler_params=pltpu.CompilerParams(
            dimension_semantics=("parallel",),
            vmem_limit_bytes=vmem_limit,
        ),
    )(uidx, iidx, scores, b_flat)

    return out[0, :B]                                   # matches torch.squeeze(out)


def _ref_forward(x, W_table, H_table, lin_w, lin_b):
    U = W_table[x[:, 0]]
    V = H_table[x[:, 1]]
    z = jnp.concatenate([U, V], axis=1)
    logits = jnp.dot(z, lin_w, precision=jax.lax.Precision.HIGHEST) + lin_b
    return jax.nn.sigmoid(logits).squeeze(-1)


if __name__ == "__main__":
    num_users, num_items, embedding_k = 32, 48, 4
    B = 8

    key = jax.random.PRNGKey(0)
    k_w, k_h, k_lw, k_lb, k_u, k_i = jax.random.split(key, 6)

    # Deterministic parameter init (shapes per NCF_BaseModel.__init__):
    #   W: Embedding(num_users, k) ~ N(0, 1)
    #   H: Embedding(num_items, k) ~ N(0, 1)
    #   linear_1: Linear(2k, 1) ~ U(-1/sqrt(2k), 1/sqrt(2k))
    W_table = jax.random.normal(k_w, (num_users, embedding_k), dtype=jnp.float32)
    H_table = jax.random.normal(k_h, (num_items, embedding_k), dtype=jnp.float32)
    bound = 1.0 / (2 * embedding_k) ** 0.5
    lin_w = jax.random.uniform(
        k_lw, (2 * embedding_k, 1), minval=-bound, maxval=bound, dtype=jnp.float32
    )
    lin_b = jax.random.uniform(
        k_lb, (1,), minval=-bound, maxval=bound, dtype=jnp.float32
    )

    # Example input: (B, 2) int indices [user, item].
    user_idx = jax.random.randint(k_u, (B,), 0, num_users)
    item_idx = jax.random.randint(k_i, (B,), 0, num_items)
    x = jnp.stack([user_idx, item_idx], axis=1).astype(jnp.int32)

    out = ncf_forward(x, W_table, H_table, lin_w, lin_b)
    out = jax.block_until_ready(out)

    ref = _ref_forward(x, W_table, H_table, lin_w, lin_b)
    assert out.shape == (B,)
    assert jnp.allclose(out, ref, atol=1e-5, rtol=1e-5), (out, ref)

    print("KERNEL_OK")
</pallas_src>

<mosaic_0001>
module attributes {stable_mosaic.version = 11 : i64} {
  func.func @_ncf_kernel(%arg0: i32, %arg1: memref<1x128xi32, #tpu.memory_space<vmem>>, %arg2: memref<1x128xi32, #tpu.memory_space<vmem>>, %arg3: memref<1x80xf32, #tpu.memory_space<vmem>>, %arg4: memref<1xf32, #tpu.memory_space<smem>>, %arg5: memref<1x128xf32, #tpu.memory_space<vmem>>) attributes {dimension_semantics = [#tpu.dimension_semantics<parallel>], iteration_bounds = array<i64: 1>, scalar_prefetch = 0 : i64, scratch_operands = 0 : i64, tpu.core_type = #tpu.core_type<tc>, window_params = [{transform_indices = @transform_0, window_bounds = array<i64: 1, 128>}, {transform_indices = @transform_1, window_bounds = array<i64: 1, 128>}, {pipeline_mode = #tpu.pipeline_mode<synchronous>, transform_indices = @transform_2, window_bounds = array<i64: 1, 80>}, {transform_indices = @transform_3, window_bounds = array<i64: 1>}, {transform_indices = @transform_4, window_bounds = array<i64: 1, 128>}]} {
    %c0 = arith.constant 0 : index
    %c0_0 = arith.constant 0 : index
    %0 = vector.load %arg1[%c0, %c0_0] : memref<1x128xi32, #tpu.memory_space<vmem>>, vector<1x128xi32>
    %c0_1 = arith.constant 0 : index
    %c0_2 = arith.constant 0 : index
    %1 = vector.load %arg2[%c0_1, %c0_2] : memref<1x128xi32, #tpu.memory_space<vmem>>, vector<1x128xi32>
    %2 = tpu.iota {dimensions = array<i32: 0>} : vector<32x128xi32>
    %3 = vector.broadcast %0 : vector<1x128xi32> to vector<32x128xi32>
    %4 = arith.cmpi eq, %2, %3 : vector<32x128xi32>
    %cst = arith.constant 1.000000e+00 : f32
    %cst_3 = arith.constant 0.000000e+00 : f32
    %5 = vector.broadcast %cst : f32 to vector<32x128xf32>
    %6 = vector.broadcast %cst_3 : f32 to vector<32x128xf32>
    %7 = arith.select %4, %5, %6 : vector<32x128xi1>, vector<32x128xf32>
    %8 = tpu.iota {dimensions = array<i32: 0>} : vector<48x128xi32>
    %9 = vector.broadcast %1 : vector<1x128xi32> to vector<48x128xi32>
    %10 = arith.cmpi eq, %8, %9 : vector<48x128xi32>
    %cst_4 = arith.constant 1.000000e+00 : f32
    %cst_5 = arith.constant 0.000000e+00 : f32
    %11 = vector.broadcast %cst_4 : f32 to vector<48x128xf32>
    %12 = vector.broadcast %cst_5 : f32 to vector<48x128xf32>
    %13 = arith.select %10, %11, %12 : vector<48x128xi1>, vector<48x128xf32>
    %14 = tpu.concatenate %7, %13 in 0 : vector<32x128xf32>, vector<48x128xf32> -> vector<80x128xf32>
    %c0_6 = arith.constant 0 : index
    %c0_7 = arith.constant 0 : index
    %15 = vector.load %arg3[%c0_6, %c0_7] : memref<1x80xf32, #tpu.memory_space<vmem>>, vector<1x80xf32>
    %cst_8 = arith.constant dense<0.000000e+00> : vector<1x128xf32>
    %16 = tpu.matmul %15, %14, %cst_8 {dimension_numbers = #tpu.dot_dimension_numbers<[1], [0], [0], [1], [0, 0, 1, 1], [], []>, precision = #tpu.contract_precision<fp32>} : vector<1x80xf32>, vector<80x128xf32>, vector<1x128xf32> -> vector<1x128xf32>
    %c0_9 = arith.constant 0 : index
    %17 = memref.load %arg4[%c0_9] : memref<1xf32, #tpu.memory_space<smem>>
    %18 = vector.broadcast %17 : f32 to vector<1x128xf32>
    %19 = arith.addf %16, %18 : vector<1x128xf32>
    %20 = arith.negf %19 : vector<1x128xf32>
    %21 = math.exp %20 : vector<1x128xf32>
    %cst_10 = arith.constant 1.000000e+00 : f32
    %22 = vector.broadcast %cst_10 : f32 to vector<1x128xf32>
    %23 = arith.addf %22, %21 : vector<1x128xf32>
    %24 = arith.divf %22, %23 : vector<1x128xf32>
    %c0_11 = arith.constant 0 : index
    %c0_12 = arith.constant 0 : index
    %25 = vector.load %arg5[%c0_11, %c0_12] : memref<1x128xf32, #tpu.memory_space<vmem>>, vector<1x128xf32>
    tpu.vector_store %arg5[%c0_11, %c0_12], %24 {strides = array<i32>} : memref<1x128xf32, #tpu.memory_space<vmem>>, vector<1x128xf32>,
    return
  }
  func.func @transform_0(%arg0: i32) -> (i32, i32) {
    %c0_i32 = arith.constant 0 : i32
    %c0_i32_0 = arith.constant 0 : i32
    return %c0_i32, %arg0 : i32, i32
  }
  func.func @transform_1(%arg0: i32) -> (i32, i32) {
    %c0_i32 = arith.constant 0 : i32
    %c0_i32_0 = arith.constant 0 : i32
    return %c0_i32, %arg0 : i32, i32
  }
  func.func @transform_2(%arg0: i32) -> (i32, i32) {
    %c0_i32 = arith.constant 0 : i32
    %c0_i32_0 = arith.constant 0 : i32
    %c0_i32_1 = arith.constant 0 : i32
    return %c0_i32, %c0_i32_0 : i32, i32
  }
  func.func @transform_3(%arg0: i32) -> i32 {
    %c0_i32 = arith.constant 0 : i32
    %c0_i32_0 = arith.constant 0 : i32
    return %c0_i32 : i32
  }
  func.func @transform_4(%arg0: i32) -> (i32, i32) {
    %c0_i32 = arith.constant 0 : i32
    %c0_i32_0 = arith.constant 0 : i32
    return %c0_i32, %arg0 : i32, i32
  }
}

</mosaic_0001>

<llo_original>
// kernel: tpu_custom_call.1
$region0: #{tpu_custom_call.1}
  #allocation0 [shape = 'u32[]', space=smem, size = 0x4, offset = 0x4, fixed_abs, tag = 'smem constant byte address 0x4 - core index']
  #allocation1 [shape = 'u32[144,128]{1,0:T(1,128)}', space=vmem, size = 0x12000, scoped, tag = 'internal scratch']
  #allocation2 [shape = 'f32[1]{0:T(128)S(6)}', space=smem, size = 0x200, scoped, tag = 'scoped memory for tpu_custom_call.1']
  %s0 = inlined_call_operand.vmem [shape: s32[1,128], index: 0, kind: input, shape index: {}]
  %s1 = inlined_call_operand.vmem [shape: s32[1,128], index: 1, kind: input, shape index: {}]
  %s2 = inlined_call_operand.vmem [shape: f32[1,80], index: 2, kind: input, shape index: {}]
  %s3 = inlined_call_operand.<no memory space> [shape: f32[1], index: 3, kind: input, shape index: {}]
  %s4 = inlined_call_operand.hbm [shape: f32[1,128], index: 4, kind: output, shape index: {}]
  %s5 = sld [smem:[#allocation0]]
  $region26: #{tpu_custom_call.1} parent=0
    _
  %s7 = ssub.s32 1, %s5
  %s8 = scalar_select 0, %s7, %s5
  %9 = sst [smem:[#allocation2]] %s3
  $region1: #{tpu_custom_call.1} parent=0
    #allocation3 [shape = 'u8[512]{0}', space=vmem, size = 0x400, scoped, tag = 'output window, operand 0, single buffered']
    #allocation4 [shape = 's32[1]{0}', space=sflag, size = 0x4, scoped, tag = 'scoped memory for tpu_custom_call.1']
    %10 = vsyncpa [#allocation4], 0
    // Predicated region
    $region2: #{tpu_custom_call.1} parent=1 // pred_check
      _
    $region3: #{tpu_custom_call.1} parent=1 // pred_check_branch
      %12 = sbr.rel (0) target = $region5
    $region4: #{tpu_custom_call.1} parent=1 // pred_region
      _
    $region5: #{tpu_custom_call.1} parent=1 // pred_fallthru
      _
    // Predicated region
    $region6: #{tpu_custom_call.1} parent=1 // pred_check
      _
    $region7: #{tpu_custom_call.1} parent=1 // pred_check_branch
      %14 = sbr.rel (0) target = $region9
    $region8: #{tpu_custom_call.1} parent=1 // pred_region
      _
    $region9: #{tpu_custom_call.1} parent=1 // pred_fallthru
      _
    // Predicated region
    $region10: #{tpu_custom_call.1} parent=1 // pred_check
      _
    $region11: #{tpu_custom_call.1} parent=1 // pred_check_branch
      %16 = sbr.rel (0) target = $region13
    $region12: #{tpu_custom_call.1} parent=1 // pred_region
      _
    $region13: #{tpu_custom_call.1} parent=1 // pred_fallthru
      _
    // Predicated region
    $region14: #{tpu_custom_call.1} parent=1 // pred_check
      _
    $region15: #{tpu_custom_call.1} parent=1 // pred_check_branch
      %18 = sbr.rel (0) target = $region17
    $region16: #{tpu_custom_call.1} parent=1 // pred_region
      _
    $region17: #{tpu_custom_call.1} parent=1 // pred_fallthru
      _
    %v19 = vld [vmem:[%s0] sm:$0x1]
    %v20 = vld [vmem:[%s1] sm:$0x1]
    %v21 = vlaneseq
    %v22 = vshrl.u32 %v21, 7
    %v23 = vadd.s32 %v22, 8
    %v24 = vadd.s32 %v22, 16
    %v25 = vadd.s32 %v22, 24
    %v26 = vlaneseq
    %v27 = vshrl.u32 %v26, 7
    %v28 = vsub.s32 0, %v27
    %v29 = vrot.slane %v19, %v28
    %vm30 = vcmp.eq.s32.totalorder %v22, %v29
    %vm31 = vcmp.eq.s32.totalorder %v23, %v29
    %vm32 = vcmp.eq.s32.totalorder %v24, %v29
    %vm33 = vcmp.eq.s32.totalorder %v25, %v29
    %v34 = vsel %vm30, 1.0, 0.0
    %v35 = vsel %vm31, 1.0, 0.0
    %v36 = vsel %vm32, 1.0, 0.0
    %v37 = vsel %vm33, 1.0, 0.0
    %v38 = vadd.s32 %v22, 32
    %v39 = vadd.s32 %v22, 40
    %v40 = vlaneseq
    %v41 = vshrl.u32 %v40, 7
    %v42 = vsub.s32 0, %v41
    %v43 = vrot.slane %v20, %v42
    %vm44 = vcmp.eq.s32.totalorder %v22, %v43
    %vm45 = vcmp.eq.s32.totalorder %v23, %v43
    %vm46 = vcmp.eq.s32.totalorder %v24, %v43
    %vm47 = vcmp.eq.s32.totalorder %v25, %v43
    %vm48 = vcmp.eq.s32.totalorder %v38, %v43
    %vm49 = vcmp.eq.s32.totalorder %v39, %v43
    %v50 = vsel %vm44, 1.0, 0.0
    %v51 = vsel %vm45, 1.0, 0.0
    %v52 = vsel %vm46, 1.0, 0.0
    %v53 = vsel %vm47, 1.0, 0.0
    %v54 = vsel %vm48, 1.0, 0.0
    %v55 = vsel %vm49, 1.0, 0.0
    %v56 = vld [vmem:[%s2] sm:$0x1]
    %s57 = sld [smem:[#allocation2]]
    %v58 = vstv %s57
    %vm59 = vcmask 654336
    %v61 = vsel %vm59, %v56, 0
    %63 = vmatprep.subr.mxu0 0.0
    %64 = vmatpush1.msra.mxu0 %v34
    %65 = vmatprep.subr.mxu0 0.0
    %66 = vmatpush1.msra.mxu0 %v35
    %67 = vmatprep.subr.mxu0 0.0
    %68 = vmatpush1.msra.mxu0 %v36
    %69 = vmatprep.subr.mxu0 0.0
    %70 = vmatpush1.msra.mxu0 %v37
    %71 = vmatprep.subr.mxu0 0.0
    %72 = vmatpush1.msra.mxu0 %v50
    %73 = vmatprep.subr.mxu0 0.0
    %74 = vmatpush1.msra.mxu0 %v51
    %75 = vmatprep.subr.mxu0 0.0
    %76 = vmatpush1.msra.mxu0 %v52
    %77 = vmatprep.subr.mxu0 0.0
    %78 = vmatpush1.msra.mxu0 %v53
    %79 = vmatprep.subr.mxu0 0.0
    %80 = vmatpush1.msra.mxu0 %v54
    %81 = vmatprep.subr.mxu0 0.0
    %82 = vmatpush1.msra.mxu0 %v55
    %83 = vmatprep.subr.mxu0 0.0
    %84 = vmatpush1.msra.mxu0 0.0
    %85 = vmatprep.subr.mxu0 0.0
    %86 = vmatpush1.msra.mxu0 0.0
    %87 = vmatprep.subr.mxu0 0.0
    %88 = vmatpush1.msra.mxu0 0.0
    %89 = vmatprep.subr.mxu0 0.0
    %90 = vmatpush1.msra.mxu0 0.0
    %91 = vmatprep.subr.mxu0 0.0
    %92 = vmatpush1.msra.mxu0 0.0
    %93 = vmatprep.subr.mxu0 0.0
    %94 = vmatpush1.msra.mxu0 0.0
    %95 = vmatprep.subr.mxu0 0.0
    %96 = vmatpush1.msra.mxu0 0.0
    %97 = vmatprep.subr.mxu0 0.0
    %98 = vmatpush1.msra.mxu0 0.0
    %99 = vmatprep.subr.mxu0 0.0
    %100 = vmatpush1.msra.mxu0 0.0
    %101 = vmatprep.subr.mxu0 0.0
    %102 = vmatpush1.msra.mxu0 0.0
    %103 = vmatprep.subr.mxu0 0.0
    %104 = vmatpush1.msra.mxu0 0.0
    %105 = vmatprep.subr.mxu0 0.0
    %106 = vmatpush1.msra.mxu0 0.0
    %107 = vmatprep.subr.mxu0 0.0
    %108 = vmatpush1.msra.mxu0 0.0
    %109 = vmatprep.subr.mxu0 0.0
    %110 = vmatpush1.msra.mxu0 0.0
    %111 = vmatprep.subr.mxu0 0.0
    %112 = vmatpush1.msra.mxu0 0.0
    %113 = vmatprep.subr.mxu0 0.0
    %114 = vmatpush1.msra.mxu0 0.0
    %115 = vmatprep.subr.mxu0 0.0
    %116 = vmatpush1.msra.mxu0 0.0
    %117 = vmatprep.subr.mxu0 0.0
    %118 = vmatpush1.msra.mxu0 0.0
    %119 = vmatprep.subr.mxu0 0.0
    %120 = vmatpush1.msra.mxu0 0.0
    %121 = vmatprep.subr.mxu0 0.0
    %122 = vmatpush1.msra.mxu0 0.0
    %123 = vmatprep.subr.mxu0 0.0
    %124 = vmatpush1.msra.mxu0 0.0
    %125 = vmatprep.subr.mxu0 0.0
    %126 = vmatpush1.msra.mxu0 0.0
    %127 = vmatprep.mubr.f32.mxu0 0.0
    %v128 = vand.u32 %v61, 4294901760
    %v129 = vsub.f32 %v61, %v128
    %v130 = vand.u32 %v129, 4294901760
    %v131 = vsub.f32 %v129, %v130
    %v132 = vand.u32 %v131, 4294901760
    %133 = vmatmul.mubr.f32.gmra.mrb[0].mxu0 %v132
    %v134 = vpop.f32.mrb[0].mxu0
    %v135 = vadd.f32 %v58, %v134
    %v136 = vpop.f32.mrb[0].mxu0
    %137 = vdwg.mxu0
    %138 = vmatprep.subr.mxu0 0.0
    %v139 = vsub.f32 %v34, %v34
    %v140 = vand.u32 %v139, 4294901760
    %v141 = vsub.f32 %v139, %v140
    %v142 = vand.u32 %v141, 4294901760
    %143 = vmatpush1.msra.mxu0 %v142
    %144 = vmatprep.subr.mxu0 0.0
    %v145 = vsub.f32 %v35, %v35
    %v146 = vand.u32 %v145, 4294901760
    %v147 = vsub.f32 %v145, %v146
    %v148 = vand.u32 %v147, 4294901760
    %149 = vmatpush1.msra.mxu0 %v148
    %150 = vmatprep.subr.mxu0 0.0
    %v151 = vsub.f32 %v36, %v36
    %v152 = vand.u32 %v151, 4294901760
    %v153 = vsub.f32 %v151, %v152
    %v154 = vand.u32 %v153, 4294901760
    %155 = vmatpush1.msra.mxu0 %v154
    %156 = vmatprep.subr.mxu0 0.0
    %v157 = vsub.f32 %v37, %v37
    %v158 = vand.u32 %v157, 4294901760
    %v159 = vsub.f32 %v157, %v158
    %v160 = vand.u32 %v159, 4294901760
    %161 = vmatpush1.msra.mxu0 %v160
    %162 = vmatprep.subr.mxu0 0.0
    %v163 = vsub.f32 %v50, %v50
    %v164 = vand.u32 %v163, 4294901760
    %v165 = vsub.f32 %v163, %v164
    %v166 = vand.u32 %v165, 4294901760
    %167 = vmatpush1.msra.mxu0 %v166
    %168 = vmatprep.subr.mxu0 0.0
    %v169 = vsub.f32 %v51, %v51
    %v170 = vand.u32 %v169, 4294901760
    %v171 = vsub.f32 %v169, %v170
    %v172 = vand.u32 %v171, 4294901760
    %173 = vmatpush1.msra.mxu0 %v172
    %174 = vmatprep.subr.mxu0 0.0
    %v175 = vsub.f32 %v52, %v52
    %v176 = vand.u32 %v175, 4294901760
    %v177 = vsub.f32 %v175, %v176
    %v178 = vand.u32 %v177, 4294901760
    %179 = vmatpush1.msra.mxu0 %v178
    %180 = vmatprep.subr.mxu0 0.0
    %v181 = vsub.f32 %v53, %v53
    %v182 = vand.u32 %v181, 4294901760
    %v183 = vsub.f32 %v181, %v182
    %v184 = vand.u32 %v183, 4294901760
    %185 = vmatpush1.msra.mxu0 %v184
    %186 = vmatprep.subr.mxu0 0.0
    %v187 = vsub.f32 %v54, %v54
    %v188 = vand.u32 %v187, 4294901760
    %v189 = vsub.f32 %v187, %v188
    %v190 = vand.u32 %v189, 4294901760
    %191 = vmatpush1.msra.mxu0 %v190
    %192 = vmatprep.subr.mxu0 0.0
    %v193 = vsub.f32 %v55, %v55
    %v194 = vand.u32 %v193, 4294901760
    %v195 = vsub.f32 %v193, %v194
    %v196 = vand.u32 %v195, 4294901760
    %197 = vmatpush1.msra.mxu0 %v196
    %198 = vmatprep.subr.mxu0 0.0
    %199 = vmatpush1.msra.mxu0 0.0
    %200 = vmatprep.subr.mxu0 0.0
    %201 = vmatpush1.msra.mxu0 0.0
    %202 = vmatprep.subr.mxu0 0.0
    %203 = vmatpush1.msra.mxu0 0.0
    %204 = vmatprep.subr.mxu0 0.0
    %205 = vmatpush1.msra.mxu0 0.0
    %206 = vmatprep.subr.mxu0 0.0
    %207 = vmatpush1.msra.mxu0 0.0
    %208 = vmatprep.subr.mxu0 0.0
    %209 = vmatpush1.msra.mxu0 0.0
    %210 = vmatprep.subr.mxu0 0.0
    %211 = vmatpush1.msra.mxu0 0.0
    %212 = vmatprep.subr.mxu0 0.0
    %213 = vmatpush1.msra.mxu0 0.0
    %214 = vmatprep.subr.mxu0 0.0
    %215 = vmatpush1.msra.mxu0 0.0
    %216 = vmatprep.subr.mxu0 0.0
    %217 = vmatpush1.msra.mxu0 0.0
    %218 = vmatprep.subr.mxu0 0.0
    %219 = vmatpush1.msra.mxu0 0.0
    %220 = vmatprep.subr.mxu0 0.0
    %221 = vmatpush1.msra.mxu0 0.0
    %222 = vmatprep.subr.mxu0 0.0
    %223 = vmatpush1.msra.mxu0 0.0
    %224 = vmatprep.subr.mxu0 0.0
    %225 = vmatpush1.msra.mxu0 0.0
    %226 = vmatprep.subr.mxu0 0.0
    %227 = vmatpush1.msra.mxu0 0.0
    %228 = vmatprep.subr.mxu0 0.0
    %229 = vmatpush1.msra.mxu0 0.0
    %230 = vmatprep.subr.mxu0 0.0
    %231 = vmatpush1.msra.mxu0 0.0
    %232 = vmatprep.subr.mxu0 0.0
    %233 = vmatpush1.msra.mxu0 0.0
    %234 = vmatprep.subr.mxu0 0.0
    %235 = vmatpush1.msra.mxu0 0.0
    %236 = vmatprep.subr.mxu0 0.0
    %237 = vmatpush1.msra.mxu0 0.0
    %238 = vmatprep.subr.mxu0 0.0
    %239 = vmatpush1.msra.mxu0 0.0
    %240 = vmatprep.subr.mxu0 0.0
    %241 = vmatpush1.msra.mxu0 0.0
    %242 = vmatprep.mubr.f32.mxu0 0.0
    %v243 = vand.u32 %v61, 4294901760
    %244 = vmatmul.mubr.f32.gmra.mrb[0].mxu0 %v243
    %v245 = vpop.f32.mrb[0].mxu0
    %v246 = vadd.f32 %v135, %v245
    %v247 = vpop.f32.mrb[0].mxu0
    %248 = vdwg.mxu0
    %249 = vmatprep.subr.mxu0 0.0
    %v250 = vsub.f32 %v34, %v34
    %251 = vmatpush1.msra.mxu0 %v250
    %252 = vmatprep.subr.mxu0 0.0
    %v253 = vsub.f32 %v35, %v35
    %254 = vmatpush1.msra.mxu0 %v253
    %255 = vmatprep.subr.mxu0 0.0
    %v256 = vsub.f32 %v36, %v36
    %257 = vmatpush1.msra.mxu0 %v256
    %258 = vmatprep.subr.mxu0 0.0
    %v259 = vsub.f32 %v37, %v37
    %260 = vmatpush1.msra.mxu0 %v259
    %261 = vmatprep.subr.mxu0 0.0
    %v262 = vsub.f32 %v50, %v50
    %263 = vmatpush1.msra.mxu0 %v262
    %264 = vmatprep.subr.mxu0 0.0
    %v265 = vsub.f32 %v51, %v51
    %266 = vmatpush1.msra.mxu0 %v265
    %267 = vmatprep.subr.mxu0 0.0
    %v268 = vsub.f32 %v52, %v52
    %269 = vmatpush1.msra.mxu0 %v268
    %270 = vmatprep.subr.mxu0 0.0
    %v271 = vsub.f32 %v53, %v53
    %272 = vmatpush1.msra.mxu0 %v271
    %273 = vmatprep.subr.mxu0 0.0
    %v274 = vsub.f32 %v54, %v54
    %275 = vmatpush1.msra.mxu0 %v274
    %276 = vmatprep.subr.mxu0 0.0
    %v277 = vsub.f32 %v55, %v55
    %278 = vmatpush1.msra.mxu0 %v277
    %279 = vmatprep.subr.mxu0 0.0
    %280 = vmatpush1.msra.mxu0 0.0
    %281 = vmatprep.subr.mxu0 0.0
    %282 = vmatpush1.msra.mxu0 0.0
    %283 = vmatprep.subr.mxu0 0.0
    %284 = vmatpush1.msra.mxu0 0.0
    %285 = vmatprep.subr.mxu0 0.0
    %286 = vmatpush1.msra.mxu0 0.0
    %287 = vmatprep.subr.mxu0 0.0
    %288 = vmatpush1.msra.mxu0 0.0
    %289 = vmatprep.subr.mxu0 0.0
    %290 = vmatpush1.msra.mxu0 0.0
    %291 = vmatprep.subr.mxu0 0.0
    %292 = vmatpush1.msra.mxu0 0.0
    %293 = vmatprep.subr.mxu0 0.0
    %294 = vmatpush1.msra.mxu0 0.0
    %295 = vmatprep.subr.mxu0 0.0
    %296 = vmatpush1.msra.mxu0 0.0
    %297 = vmatprep.subr.mxu0 0.0
    %298 = vmatpush1.msra.mxu0 0.0
    %299 = vmatprep.subr.mxu0 0.0
    %300 = vmatpush1.msra.mxu0 0.0
    %301 = vmatprep.subr.mxu0 0.0
    %302 = vmatpush1.msra.mxu0 0.0
    %303 = vmatprep.subr.mxu0 0.0
    %304 = vmatpush1.msra.mxu0 0.0
    %305 = vmatprep.subr.mxu0 0.0
    %306 = vmatpush1.msra.mxu0 0.0
    %307 = vmatprep.subr.mxu0 0.0
    %308 = vmatpush1.msra.mxu0 0.0
    %309 = vmatprep.subr.mxu0 0.0
    %310 = vmatpush1.msra.mxu0 0.0
    %311 = vmatprep.subr.mxu0 0.0
    %312 = vmatpush1.msra.mxu0 0.0
    %313 = vmatprep.subr.mxu0 0.0
    %314 = vmatpush1.msra.mxu0 0.0
    %315 = vmatprep.subr.mxu0 0.0
    %316 = vmatpush1.msra.mxu0 0.0
    %317 = vmatprep.subr.mxu0 0.0
    %318 = vmatpush1.msra.mxu0 0.0
    %319 = vmatprep.subr.mxu0 0.0
    %320 = vmatpush1.msra.mxu0 0.0
    %321 = vmatprep.subr.mxu0 0.0
    %322 = vmatpush1.msra.mxu0 0.0
    %323 = vmatprep.mubr.f32.mxu0 0.0
    %v324 = vand.u32 %v61, 4294901760
    %v325 = vsub.f32 %v61, %v324
    %326 = vmatmul.mubr.f32.gmra.mrb[0].mxu0 %v325
    %v327 = vpop.f32.mrb[0].mxu0
    %v328 = vadd.f32 %v246, %v327
    %v329 = vpop.f32.mrb[0].mxu0
    %330 = vdwg.mxu0
    %331 = vmatprep.subr.mxu0 0.0
    %332 = vmatpush1.msra.mxu0 %v34
    %333 = vmatprep.subr.mxu0 0.0
    %334 = vmatpush1.msra.mxu0 %v35
    %335 = vmatprep.subr.mxu0 0.0
    %336 = vmatpush1.msra.mxu0 %v36
    %337 = vmatprep.subr.mxu0 0.0
    %338 = vmatpush1.msra.mxu0 %v37
    %339 = vmatprep.subr.mxu0 0.0
    %340 = vmatpush1.msra.mxu0 %v50
    %341 = vmatprep.subr.mxu0 0.0
    %342 = vmatpush1.msra.mxu0 %v51
    %343 = vmatprep.subr.mxu0 0.0
    %344 = vmatpush1.msra.mxu0 %v52
    %345 = vmatprep.subr.mxu0 0.0
    %346 = vmatpush1.msra.mxu0 %v53
    %347 = vmatprep.subr.mxu0 0.0
    %348 = vmatpush1.msra.mxu0 %v54
    %349 = vmatprep.subr.mxu0 0.0
    %350 = vmatpush1.msra.mxu0 %v55
    %351 = vmatprep.subr.mxu0 0.0
    %352 = vmatpush1.msra.mxu0 0.0
    %353 = vmatprep.subr.mxu0 0.0
    %354 = vmatpush1.msra.mxu0 0.0
    %355 = vmatprep.subr.mxu0 0.0
    %356 = vmatpush1.msra.mxu0 0.0
    %357 = vmatprep.subr.mxu0 0.0
    %358 = vmatpush1.msra.mxu0 0.0
    %359 = vmatprep.subr.mxu0 0.0
    %360 = vmatpush1.msra.mxu0 0.0
    %361 = vmatprep.subr.mxu0 0.0
    %362 = vmatpush1.msra.mxu0 0.0
    %363 = vmatprep.subr.mxu0 0.0
    %364 = vmatpush1.msra.mxu0 0.0
    %365 = vmatprep.subr.mxu0 0.0
    %366 = vmatpush1.msra.mxu0 0.0
    %367 = vmatprep.subr.mxu0 0.0
    %368 = vmatpush1.msra.mxu0 0.0
    %369 = vmatprep.subr.mxu0 0.0
    %370 = vmatpush1.msra.mxu0 0.0
    %371 = vmatprep.subr.mxu0 0.0
    %372 = vmatpush1.msra.mxu0 0.0
    %373 = vmatprep.subr.mxu0 0.0
    %374 = vmatpush1.msra.mxu0 0.0
    %375 = vmatprep.subr.mxu0 0.0
    %376 = vmatpush1.msra.mxu0 0.0
    %377 = vmatprep.subr.mxu0 0.0
    %378 = vmatpush1.msra.mxu0 0.0
    %379 = vmatprep.subr.mxu0 0.0
    %380 = vmatpush1.msra.mxu0 0.0
    %381 = vmatprep.subr.mxu0 0.0
    %382 = vmatpush1.msra.mxu0 0.0
    %383 = vmatprep.subr.mxu0 0.0
    %384 = vmatpush1.msra.mxu0 0.0
    %385 = vmatprep.subr.mxu0 0.0
    %386 = vmatpush1.msra.mxu0 0.0
    %387 = vmatprep.subr.mxu0 0.0
    %388 = vmatpush1.msra.mxu0 0.0
    %389 = vmatprep.subr.mxu0 0.0
    %390 = vmatpush1.msra.mxu0 0.0
    %391 = vmatprep.subr.mxu0 0.0
    %392 = vmatpush1.msra.mxu0 0.0
    %393 = vmatprep.subr.mxu0 0.0
    %394 = vmatpush1.msra.mxu0 0.0
    %395 = vmatprep.mubr.f32.mxu0 0.0
    %v396 = vand.u32 %v61, 4294901760
    %v397 = vsub.f32 %v61, %v396
    %v398 = vand.u32 %v397, 4294901760
    %399 = vmatmul.mubr.f32.gmra.mrb[0].mxu0 %v398
    %v400 = vpop.f32.mrb[0].mxu0
    %v401 = vadd.f32 %v328, %v400
    %v402 = vpop.f32.mrb[0].mxu0
    %403 = vdwg.mxu0
    %404 = vmatprep.subr.mxu0 0.0
    %v405 = vsub.f32 %v34, %v34
    %v406 = vand.u32 %v405, 4294901760
    %407 = vmatpush1.msra.mxu0 %v406
    %408 = vmatprep.subr.mxu0 0.0
    %v409 = vsub.f32 %v35, %v35
    %v410 = vand.u32 %v409, 4294901760
    %411 = vmatpush1.msra.mxu0 %v410
    %412 = vmatprep.subr.mxu0 0.0
    %v413 = vsub.f32 %v36, %v36
    %v414 = vand.u32 %v413, 4294901760
    %415 = vmatpush1.msra.mxu0 %v414
    %416 = vmatprep.subr.mxu0 0.0
    %v417 = vsub.f32 %v37, %v37
    %v418 = vand.u32 %v417, 4294901760
    %419 = vmatpush1.msra.mxu0 %v418
    %420 = vmatprep.subr.mxu0 0.0
    %v421 = vsub.f32 %v50, %v50
    %v422 = vand.u32 %v421, 4294901760
    %423 = vmatpush1.msra.mxu0 %v422
    %424 = vmatprep.subr.mxu0 0.0
    %v425 = vsub.f32 %v51, %v51
    %v426 = vand.u32 %v425, 4294901760
    %427 = vmatpush1.msra.mxu0 %v426
    %428 = vmatprep.subr.mxu0 0.0
    %v429 = vsub.f32 %v52, %v52
    %v430 = vand.u32 %v429, 4294901760
    %431 = vmatpush1.msra.mxu0 %v430
    %432 = vmatprep.subr.mxu0 0.0
    %v433 = vsub.f32 %v53, %v53
    %v434 = vand.u32 %v433, 4294901760
    %435 = vmatpush1.msra.mxu0 %v434
    %436 = vmatprep.subr.mxu0 0.0
    %v437 = vsub.f32 %v54, %v54
    %v438 = vand.u32 %v437, 4294901760
    %439 = vmatpush1.msra.mxu0 %v438
    %440 = vmatprep.subr.mxu0 0.0
    %v441 = vsub.f32 %v55, %v55
    %v442 = vand.u32 %v441, 4294901760
    %443 = vmatpush1.msra.mxu0 %v442
    %444 = vmatprep.subr.mxu0 0.0
    %445 = vmatpush1.msra.mxu0 0.0
    %446 = vmatprep.subr.mxu0 0.0
    %447 = vmatpush1.msra.mxu0 0.0
    %448 = vmatprep.subr.mxu0 0.0
    %449 = vmatpush1.msra.mxu0 0.0
    %450 = vmatprep.subr.mxu0 0.0
    %451 = vmatpush1.msra.mxu0 0.0
    %452 = vmatprep.subr.mxu0 0.0
    %453 = vmatpush1.msra.mxu0 0.0
    %454 = vmatprep.subr.mxu0 0.0
    %455 = vmatpush1.msra.mxu0 0.0
    %456 = vmatprep.subr.mxu0 0.0
    %457 = vmatpush1.msra.mxu0 0.0
    %458 = vmatprep.subr.mxu0 0.0
    %459 = vmatpush1.msra.mxu0 0.0
    %460 = vmatprep.subr.mxu0 0.0
    %461 = vmatpush1.msra.mxu0 0.0
    %462 = vmatprep.subr.mxu0 0.0
    %463 = vmatpush1.msra.mxu0 0.0
    %464 = vmatprep.subr.mxu0 0.0
    %465 = vmatpush1.msra.mxu0 0.0
    %466 = vmatprep.subr.mxu0 0.0
    %467 = vmatpush1.msra.mxu0 0.0
    %468 = vmatprep.subr.mxu0 0.0
    %469 = vmatpush1.msra.mxu0 0.0
    %470 = vmatprep.subr.mxu0 0.0
    %471 = vmatpush1.msra.mxu0 0.0
    %472 = vmatprep.subr.mxu0 0.0
    %473 = vmatpush1.msra.mxu0 0.0
    %474 = vmatprep.subr.mxu0 0.0
    %475 = vmatpush1.msra.mxu0 0.0
    %476 = vmatprep.subr.mxu0 0.0
    %477 = vmatpush1.msra.mxu0 0.0
    %478 = vmatprep.subr.mxu0 0.0
    %479 = vmatpush1.msra.mxu0 0.0
    %480 = vmatprep.subr.mxu0 0.0
    %481 = vmatpush1.msra.mxu0 0.0
    %482 = vmatprep.subr.mxu0 0.0
    %483 = vmatpush1.msra.mxu0 0.0
    %484 = vmatprep.subr.mxu0 0.0
    %485 = vmatpush1.msra.mxu0 0.0
    %486 = vmatprep.subr.mxu0 0.0
    %487 = vmatpush1.msra.mxu0 0.0
    %488 = vmatprep.mubr.f32.mxu0 0.0
    %v489 = vand.u32 %v61, 4294901760
    %490 = vmatmul.mubr.f32.gmra.mrb[0].mxu0 %v489
    %v491 = vpop.f32.mrb[0].mxu0
    %v492 = vadd.f32 %v401, %v491
    %v493 = vpop.f32.mrb[0].mxu0
    %494 = vdwg.mxu0
    %495 = vmatprep.subr.mxu0 0.0
    %496 = vmatpush1.msra.mxu0 %v34
    %497 = vmatprep.subr.mxu0 0.0
    %498 = vmatpush1.msra.mxu0 %v35
    %499 = vmatprep.subr.mxu0 0.0
    %500 = vmatpush1.msra.mxu0 %v36
    %501 = vmatprep.subr.mxu0 0.0
    %502 = vmatpush1.msra.mxu0 %v37
    %503 = vmatprep.subr.mxu0 0.0
    %504 = vmatpush1.msra.mxu0 %v50
    %505 = vmatprep.subr.mxu0 0.0
    %506 = vmatpush1.msra.mxu0 %v51
    %507 = vmatprep.subr.mxu0 0.0
    %508 = vmatpush1.msra.mxu0 %v52
    %509 = vmatprep.subr.mxu0 0.0
    %510 = vmatpush1.msra.mxu0 %v53
    %511 = vmatprep.subr.mxu0 0.0
    %512 = vmatpush1.msra.mxu0 %v54
    %513 = vmatprep.subr.mxu0 0.0
    %514 = vmatpush1.msra.mxu0 %v55
    %515 = vmatprep.subr.mxu0 0.0
    %516 = vmatpush1.msra.mxu0 0.0
    %517 = vmatprep.subr.mxu0 0.0
    %518 = vmatpush1.msra.mxu0 0.0
    %519 = vmatprep.subr.mxu0 0.0
    %520 = vmatpush1.msra.mxu0 0.0
    %521 = vmatprep.subr.mxu0 0.0
    %522 = vmatpush1.msra.mxu0 0.0
    %523 = vmatprep.subr.mxu0 0.0
    %524 = vmatpush1.msra.mxu0 0.0
    %525 = vmatprep.subr.mxu0 0.0
    %526 = vmatpush1.msra.mxu0 0.0
    %527 = vmatprep.subr.mxu0 0.0
    %528 = vmatpush1.msra.mxu0 0.0
    %529 = vmatprep.subr.mxu0 0.0
    %530 = vmatpush1.msra.mxu0 0.0
    %531 = vmatprep.subr.mxu0 0.0
    %532 = vmatpush1.msra.mxu0 0.0
    %533 = vmatprep.subr.mxu0 0.0
    %534 = vmatpush1.msra.mxu0 0.0
    %535 = vmatprep.subr.mxu0 0.0
    %536 = vmatpush1.msra.mxu0 0.0
    %537 = vmatprep.subr.mxu0 0.0
    %538 = vmatpush1.msra.mxu0 0.0
    %539 = vmatprep.subr.mxu0 0.0
    %540 = vmatpush1.msra.mxu0 0.0
    %541 = vmatprep.subr.mxu0 0.0
    %542 = vmatpush1.msra.mxu0 0.0
    %543 = vmatprep.subr.mxu0 0.0
    %544 = vmatpush1.msra.mxu0 0.0
    %545 = vmatprep.subr.mxu0 0.0
    %546 = vmatpush1.msra.mxu0 0.0
    %547 = vmatprep.subr.mxu0 0.0
    %548 = vmatpush1.msra.mxu0 0.0
    %549 = vmatprep.subr.mxu0 0.0
    %550 = vmatpush1.msra.mxu0 0.0
    %551 = vmatprep.subr.mxu0 0.0
    %552 = vmatpush1.msra.mxu0 0.0
    %553 = vmatprep.subr.mxu0 0.0
    %554 = vmatpush1.msra.mxu0 0.0
    %555 = vmatprep.subr.mxu0 0.0
    %556 = vmatpush1.msra.mxu0 0.0
    %557 = vmatprep.subr.mxu0 0.0
    %558 = vmatpush1.msra.mxu0 0.0
    %559 = vmatprep.mubr.f32.mxu0 0.0
    %v560 = vand.u32 %v61, 4294901760
    %561 = vmatmul.mubr.f32.gmra.mrb[0].mxu0 %v560
    %v562 = vpop.f32.mrb[0].mxu0
    %v563 = vadd.f32 %v492, %v562
    %v564 = vpop.f32.mrb[0].mxu0
    %565 = vdwg.mxu0
    %v566 = vxor.u32 %v563, 2147483648
    %v567 = vmul.f32 %v566, 1.442695
    %v568 = vpow.pop %v567
    %v569 = vadd.f32 %v568, 1.0
    %v570 = vrcp.pop %v569
    %v571 = vmul.f32 1.0, %v570
    %572 = vst [vmem:[#allocation3] sm:$0x1] %v571
    // Predicated region
    $region18: #{tpu_custom_call.1} parent=1 // pred_check
      _
    $region19: #{tpu_custom_call.1} parent=1 // pred_check_branch
      %574 = sbr.rel (0) target = $region21
    $region20: #{tpu_custom_call.1} parent=1 // pred_region
      %s576 = ssub.s32 16, 16
      %577 = vsyncadd [#allocation4], %s576
      %s579 = sshll.u32 [#allocation3], 4
      %s580 = int_to_ptr.vmem [resolvable:$true] %s579
      %582 = dma.vmem_to_hbm [thread:$0]  %s580, 16, %s4, [#allocation4]
    $region21: #{tpu_custom_call.1} parent=1 // pred_fallthru
      _
    // Predicated region
    $region22: #{tpu_custom_call.1} parent=1 // pred_check
      _
    $region23: #{tpu_custom_call.1} parent=1 // pred_check_branch
      %584 = sbr.rel (0) target = $region25
    $region24: #{tpu_custom_call.1} parent=1 // pred_region
      %585 = dma.done [#allocation4], 16
    $region25: #{tpu_custom_call.1} parent=1 // pred_fallthru
      _
    %586 = vsyncpa [#allocation4], 1

</llo_original>
